<compile_context>
chip_gen: v6e
topology: v6e:2x2x1
jax: 0.10.0
libtpu: 0.0.40
codegen_flags: <defaults>
</compile_context>

<pallas_src>
import functools
import math

import jax
import jax.numpy as jnp
import numpy as np
from jax import lax
from jax.experimental import pallas as pl
from jax.experimental.pallas import tpu as pltpu

_LANE = 128
_SUBLANE = 8
_TH_TARGET = 128                      # output-row block (MXU M dim); multiple of 8
_VMEM_BUDGET = 24 * 1024 * 1024       # resident working-set target (fits v7x's 64 MiB VMEM)


def _round_up(n: int, m: int) -> int:
    return ((n + m - 1) // m) * m


def _cdiv(a: int, b: int) -> int:
    return -(-a // b)


def _nearest_src_indices(out_size: int, in_size: int, scale: float) -> np.ndarray:
    # PyTorch nearest (scale_factor given, recompute_scale_factor default):
    #   src = min(floor(dst * (1/scale)), in_size - 1)
    dst = np.arange(out_size, dtype=np.float64)
    src = np.floor(dst * (1.0 / scale)).astype(np.int64)
    return np.minimum(src, in_size - 1).astype(np.int32)


def _resize_kernel(src_h_ref, src_w_ref, x_ref, o_ref, selw_ref):
    """Compute one (C, TH, TW) output block.

    src_h_ref: (TH, 1) int32  source-row index for each output row of this block
    src_w_ref: (1, TW) int32  source-col index for each output col of this W tile
    x_ref    : (C, H, W)      whole image; constant block index -> VMEM-resident
    o_ref    : (C, TH, TW)    output block (lane-dense when W_out >= 128)
    selw_ref : (W, TW) VMEM scratch: one-hot W selection, rebuilt once per W tile
    """
    C, H, W = x_ref.shape
    TH, TW = o_ref.shape[1], o_ref.shape[2]

    # W-selection one-hot: built only on the first row-block of each W tile (inner axis i).
    @pl.when(pl.program_id(1) == 0)
    def _():
        w_iota = lax.broadcasted_iota(jnp.int32, (W, TW), 0)
        selw_ref[...] = (w_iota == src_w_ref[...]).astype(selw_ref.dtype)

    # Row-selection one-hot for this block of TH output rows (cheap VPU compare + cast).
    h_iota = lax.broadcasted_iota(jnp.int32, (TH, H), 1)
    sel_h = (h_iota == src_h_ref[...]).astype(x_ref.dtype)          # (TH, H)

    sel_w = selw_ref[...]                                           # (W, TW)
    for c in range(C):  # static, small; each matmul has M = TH (up to 128)
        rows = jnp.dot(sel_h, x_ref[c], preferred_element_type=jnp.float32)    # (TH, W)
        o_ref[c] = jnp.dot(rows.astype(x_ref.dtype), sel_w,
                           preferred_element_type=jnp.float32).astype(o_ref.dtype)


def _choose_tiles(C, H, W, h_out, w_out, itemsize):
    """Pick (TH, TW): TH multiple of 8 (or full), TW multiple of 128 (or full), within budget."""
    th = _TH_TARGET if h_out >= _TH_TARGET else h_out
    if w_out < _LANE:
        return th, w_out
    tw = (w_out // _LANE) * _LANE

    def resident(tw_):
        return itemsize * (
            2 * C * _round_up(H, _SUBLANE) * _round_up(W, _LANE)        # image (dbl-buffered spec)
            + _round_up(W, _SUBLANE) * tw_                               # sel_w scratch
            + _round_up(th, _SUBLANE) * (_round_up(H, _LANE) + _round_up(W, _LANE))  # sel_h + rows
            + 2 * C * _round_up(th, _SUBLANE) * tw_                      # output blocks
        )

    while tw > _LANE and resident(tw) > _VMEM_BUDGET:
        tw = max(_LANE, (tw // 2 // _LANE) * _LANE)
    return th, tw


@functools.partial(jax.jit, static_argnames=("h_out", "w_out", "th", "tw"))
def _resize_call(x, src_h_v, src_w_v, *, h_out, w_out, th, tw):
    C, H, W = x.shape
    n_ht = _cdiv(h_out, th)
    n_wt = _cdiv(w_out, tw)
    itemsize = jnp.dtype(x.dtype).itemsize

    # Layout-padded VMEM footprint estimate -> vmem_limit (never below the 32 MiB default).
    est = itemsize * (
        2 * C * _round_up(H, _SUBLANE) * _round_up(W, _LANE)
        + _round_up(W, _SUBLANE) * _round_up(tw, _LANE)
        + _round_up(th, _SUBLANE) * (_round_up(H, _LANE) + _round_up(W, _LANE))
        + 2 * C * _round_up(th, _SUBLANE) * _round_up(tw, _LANE)
    )
    vmem_limit = int(min(64 * 1024 * 1024, max(32 * 1024 * 1024, 2 * est)))

    steps = n_ht * n_wt
    flops = 2 * steps * C * (th * H * W + th * W * tw)
    bytes_accessed = itemsize * (C * H * W + C * h_out * w_out) \
        + 4 * (int(src_h_v.size) + int(src_w_v.size))

    out = pl.pallas_call(
        _resize_kernel,
        out_shape=jax.ShapeDtypeStruct((C, h_out, w_out), x.dtype),
        grid_spec=pltpu.PrefetchScalarGridSpec(
            num_scalar_prefetch=0,
            # W-tile axis outer, row-block axis inner: sel_w scratch is rebuilt only when
            # the W tile changes; the image block index is constant so x is fetched once.
            grid=(n_wt, n_ht),
            in_specs=[
                pl.BlockSpec((th, 1), lambda j, i: (i, 0)),        # src_h rows for this block
                pl.BlockSpec((1, tw), lambda j, i: (0, j)),        # src_w cols for this W tile
                pl.BlockSpec((C, H, W), lambda j, i: (0, 0, 0)),   # full image, VMEM-resident
            ],
            out_specs=pl.BlockSpec((C, th, tw), lambda j, i: (0, i, j)),
            scratch_shapes=[pltpu.VMEM((W, tw), x.dtype)],
        ),
        compiler_params=pltpu.CompilerParams(
            # i==0-gated sel_w rebuild makes the inner axis order-dependent -> "arbitrary".
            dimension_semantics=("parallel", "arbitrary"),
            vmem_limit_bytes=vmem_limit,
        ),
        cost_estimate=pl.CostEstimate(flops=flops, transcendentals=0,
                                      bytes_accessed=bytes_accessed),
    )(src_h_v, src_w_v, x)
    return out


def random_resize(x: jax.Array, scale: float) -> jax.Array:
    """Nearest-neighbor resize of a (C, H, W) array by `scale` (static python float)."""
    C, H, W = x.shape
    h_out = int(math.floor(H * scale))
    w_out = int(math.floor(W * scale))
    src_h = _nearest_src_indices(h_out, H, scale)
    src_w = _nearest_src_indices(w_out, W, scale)

    orig_dtype = x.dtype
    if jnp.issubdtype(orig_dtype, jnp.floating):
        compute_dtype = orig_dtype
    elif jnp.issubdtype(orig_dtype, jnp.integer) and np.dtype(orig_dtype).itemsize == 1:
        compute_dtype = jnp.bfloat16       # 8-bit ints are exact in bf16; full-rate MXU
    else:
        compute_dtype = jnp.float32        # wide ints: keep exact up to 2^24

    th, tw = _choose_tiles(C, H, W, h_out, w_out, jnp.dtype(compute_dtype).itemsize)
    n_ht = _cdiv(h_out, th)
    n_wt = _cdiv(w_out, tw)

    # Pad index vectors so their input blocks are always fully valid; padded entries are
    # clamped in-range and the corresponding output rows/cols are masked on writeback.
    src_h_pad = np.full((n_ht * th, 1), H - 1, dtype=np.int32)
    src_h_pad[:h_out, 0] = src_h
    src_w_pad = np.full((1, n_wt * tw), W - 1, dtype=np.int32)
    src_w_pad[0, :w_out] = src_w

    y = _resize_call(x.astype(compute_dtype), jnp.asarray(src_h_pad), jnp.asarray(src_w_pad),
                     h_out=h_out, w_out=w_out, th=th, tw=tw)
    if y.dtype != orig_dtype:
        y = y.astype(orig_dtype)
    return y


class RandomResize:
    """Mirror of the PyTorch module; scale drawn once per forward (static for tracing).

    `num_scales`: optionally snap the random scale to a uniform grid of that many values
    to bound the number of distinct output shapes (i.e. distinct compiles). Default None
    keeps the original continuous-uniform semantics; compiles are cached per output shape.
    """

    def __init__(self, scale=(0.5, 2.0), mode="nearest", key=None, num_scales=None):
        assert mode == "nearest", "only 'nearest' is implemented"
        self.scale = scale
        self.mode = mode
        self.num_scales = num_scales
        self._key = key if key is not None else jax.random.PRNGKey(0)

    def get_random_scale(self) -> float:
        self._key, sub = jax.random.split(self._key)
        s = float(jax.random.uniform(sub, (), minval=self.scale[0], maxval=self.scale[1]))
        if self.num_scales is not None and self.num_scales > 1:
            lo, hi = self.scale
            step = (hi - lo) / (self.num_scales - 1)
            s = lo + round((s - lo) / step) * step
        return s

    def __call__(self, x: jax.Array) -> jax.Array:
        return random_resize(x, self.get_random_scale())


def _ref_resize(x: np.ndarray, scale: float) -> np.ndarray:
    C, H, W = x.shape
    h_out = int(math.floor(H * scale))
    w_out = int(math.floor(W * scale))
    src_h = _nearest_src_indices(h_out, H, scale)
    src_w = _nearest_src_indices(w_out, W, scale)
    return x[:, src_h[:, None], src_w[None, :]]


if __name__ == "__main__":
    key = jax.random.PRNGKey(0)
    k_x, k_scale = jax.random.split(key)

    # Small shape consistent with the module's (C, H, W) input.
    C, H, W = 4, 16, 16
    x = jax.random.normal(k_x, (C, H, W), dtype=jnp.float32)

    module = RandomResize(scale=(0.5, 2.0), key=k_scale)
    y = jax.block_until_ready(module(x))

    # Re-draw the same scale by reconstructing the module with the same key.
    module_ref = RandomResize(scale=(0.5, 2.0), key=k_scale)
    s = module_ref.get_random_scale()
    np.testing.assert_allclose(np.asarray(y), _ref_resize(np.asarray(x), s),
                               rtol=1e-6, atol=1e-6)

    # Exercise the blocked / tiled path (multiple row blocks and W tiles, ragged blocks).
    x2 = jax.random.normal(k_x, (3, 96, 96), dtype=jnp.float32)
    for s2 in (1.6, 0.53):
        y2 = jax.block_until_ready(random_resize(x2, s2))
        np.testing.assert_allclose(np.asarray(y2), _ref_resize(np.asarray(x2), s2),
                                   rtol=1e-6, atol=1e-6)

    print("KERNEL_OK")
</pallas_src>

<mosaic_0001>
module attributes {stable_mosaic.version = 11 : i64} {
  func.func @_resize_kernel(%arg0: i32, %arg1: i32, %arg2: memref<10x1xi32, #tpu.memory_space<vmem>>, %arg3: memref<1x10xi32, #tpu.memory_space<vmem>>, %arg4: memref<4x16x16xf32, #tpu.memory_space<vmem>>, %arg5: memref<4x10x10xf32, #tpu.memory_space<vmem>>, %arg6: memref<16x10xf32, #tpu.memory_space<vmem>>) attributes {dimension_semantics = [#tpu.dimension_semantics<parallel>, #tpu.dimension_semantics<arbitrary>], iteration_bounds = array<i64: 1, 1>, scalar_prefetch = 0 : i64, scratch_operands = 1 : i64, tpu.core_type = #tpu.core_type<tc>, window_params = [{transform_indices = @transform_0, window_bounds = array<i64: 10, 1>}, {transform_indices = @transform_1, window_bounds = array<i64: 1, 10>}, {pipeline_mode = #tpu.pipeline_mode<synchronous>, transform_indices = @transform_2, window_bounds = array<i64: 4, 16, 16>}, {transform_indices = @transform_3, window_bounds = array<i64: 4, 10, 10>}]} {
    %c0_i32 = arith.constant 0 : i32
    %0 = arith.cmpi eq, %arg1, %c0_i32 : i32
    %1 = arith.extui %0 : i1 to i32
    %c0_i32_0 = arith.constant 0 : i32
    %2 = arith.cmpi ne, %1, %c0_i32_0 : i32
    scf.if %2 {
      %38 = tpu.iota {dimensions = array<i32: 0>} : vector<16x10xi32>
      %c0_32 = arith.constant 0 : index
      %c0_33 = arith.constant 0 : index
      %39 = vector.load %arg3[%c0_32, %c0_33] : memref<1x10xi32, #tpu.memory_space<vmem>>, vector<1x10xi32>
      %40 = vector.broadcast %39 : vector<1x10xi32> to vector<16x10xi32>
      %41 = arith.cmpi eq, %38, %40 : vector<16x10xi32>
      %42 = arith.extui %41 : vector<16x10xi1> to vector<16x10xi32>
      %43 = arith.sitofp %42 : vector<16x10xi32> to vector<16x10xf32>
      %c0_34 = arith.constant 0 : index
      %c0_35 = arith.constant 0 : index
      %44 = vector.load %arg6[%c0_34, %c0_35] : memref<16x10xf32, #tpu.memory_space<vmem>>, vector<16x10xf32>
      tpu.vector_store %arg6[%c0_34, %c0_35], %43 {strides = array<i32>} : memref<16x10xf32, #tpu.memory_space<vmem>>, vector<16x10xf32>,
    } else {
    }
    %3 = tpu.iota {dimensions = array<i32: 1>} : vector<10x16xi32>
    %c0 = arith.constant 0 : index
    %c0_1 = arith.constant 0 : index
    %4 = vector.load %arg2[%c0, %c0_1] : memref<10x1xi32, #tpu.memory_space<vmem>>, vector<10x1xi32>
    %5 = vector.broadcast %4 : vector<10x1xi32> to vector<10x16xi32>
    %6 = arith.cmpi eq, %3, %5 : vector<10x16xi32>
    %7 = arith.extui %6 : vector<10x16xi1> to vector<10x16xi32>
    %8 = arith.sitofp %7 : vector<10x16xi32> to vector<10x16xf32>
    %c0_2 = arith.constant 0 : index
    %c0_3 = arith.constant 0 : index
    %9 = vector.load %arg6[%c0_2, %c0_3] : memref<16x10xf32, #tpu.memory_space<vmem>>, vector<16x10xf32>
    %c0_4 = arith.constant 0 : index
    %c0_5 = arith.constant 0 : index
    %c0_6 = arith.constant 0 : index
    %10 = vector.load %arg4[%c0_4, %c0_5, %c0_6] : memref<4x16x16xf32, #tpu.memory_space<vmem>>, vector<1x16x16xf32>
    %11 = vector.shape_cast %10 : vector<1x16x16xf32> to vector<16x16xf32>
    %cst = arith.constant dense<0.000000e+00> : vector<10x16xf32>
    %12 = tpu.matmul %8, %11, %cst {dimension_numbers = #tpu.dot_dimension_numbers<[1], [0], [0], [1], [0, 0, 1, 1], [], []>} : vector<10x16xf32>, vector<16x16xf32>, vector<10x16xf32> -> vector<10x16xf32>
    %cst_7 = arith.constant dense<0.000000e+00> : vector<10x10xf32>
    %13 = tpu.matmul %12, %9, %cst_7 {dimension_numbers = #tpu.dot_dimension_numbers<[1], [0], [0], [1], [0, 0, 1, 1], [], []>} : vector<10x16xf32>, vector<16x10xf32>, vector<10x10xf32> -> vector<10x10xf32>
    %c0_8 = arith.constant 0 : index
    %c0_9 = arith.constant 0 : index
    %c0_10 = arith.constant 0 : index
    %14 = vector.load %arg5[%c0_8, %c0_9, %c0_10] : memref<4x10x10xf32, #tpu.memory_space<vmem>>, vector<1x10x10xf32>
    %15 = vector.shape_cast %14 : vector<1x10x10xf32> to vector<10x10xf32>
    %16 = vector.shape_cast %13 : vector<10x10xf32> to vector<1x10x10xf32>
    tpu.vector_store %arg5[%c0_8, %c0_9, %c0_10], %16 {strides = array<i32>} : memref<4x10x10xf32, #tpu.memory_space<vmem>>, vector<1x10x10xf32>,
    %c1 = arith.constant 1 : index
    %c0_11 = arith.constant 0 : index
    %c0_12 = arith.constant 0 : index
    %17 = vector.load %arg4[%c1, %c0_11, %c0_12] : memref<4x16x16xf32, #tpu.memory_space<vmem>>, vector<1x16x16xf32>
    %18 = vector.shape_cast %17 : vector<1x16x16xf32> to vector<16x16xf32>
    %cst_13 = arith.constant dense<0.000000e+00> : vector<10x16xf32>
    %19 = tpu.matmul %8, %18, %cst_13 {dimension_numbers = #tpu.dot_dimension_numbers<[1], [0], [0], [1], [0, 0, 1, 1], [], []>} : vector<10x16xf32>, vector<16x16xf32>, vector<10x16xf32> -> vector<10x16xf32>
    %cst_14 = arith.constant dense<0.000000e+00> : vector<10x10xf32>
    %20 = tpu.matmul %19, %9, %cst_14 {dimension_numbers = #tpu.dot_dimension_numbers<[1], [0], [0], [1], [0, 0, 1, 1], [], []>} : vector<10x16xf32>, vector<16x10xf32>, vector<10x10xf32> -> vector<10x10xf32>
    %c1_15 = arith.constant 1 : index
    %c0_16 = arith.constant 0 : index
    %c0_17 = arith.constant 0 : index
    %21 = vector.load %arg5[%c1_15, %c0_16, %c0_17] : memref<4x10x10xf32, #tpu.memory_space<vmem>>, vector<1x10x10xf32>
    %22 = vector.shape_cast %21 : vector<1x10x10xf32> to vector<10x10xf32>
    %23 = vector.shape_cast %20 : vector<10x10xf32> to vector<1x10x10xf32>
    tpu.vector_store %arg5[%c1_15, %c0_16, %c0_17], %23 {strides = array<i32>} : memref<4x10x10xf32, #tpu.memory_space<vmem>>, vector<1x10x10xf32>,
    %c2 = arith.constant 2 : index
    %c0_18 = arith.constant 0 : index
    %c0_19 = arith.constant 0 : index
    %24 = vector.load %arg4[%c2, %c0_18, %c0_19] : memref<4x16x16xf32, #tpu.memory_space<vmem>>, vector<1x16x16xf32>
    %25 = vector.shape_cast %24 : vector<1x16x16xf32> to vector<16x16xf32>
    %cst_20 = arith.constant dense<0.000000e+00> : vector<10x16xf32>
    %26 = tpu.matmul %8, %25, %cst_20 {dimension_numbers = #tpu.dot_dimension_numbers<[1], [0], [0], [1], [0, 0, 1, 1], [], []>} : vector<10x16xf32>, vector<16x16xf32>, vector<10x16xf32> -> vector<10x16xf32>
    %cst_21 = arith.constant dense<0.000000e+00> : vector<10x10xf32>
    %27 = tpu.matmul %26, %9, %cst_21 {dimension_numbers = #tpu.dot_dimension_numbers<[1], [0], [0], [1], [0, 0, 1, 1], [], []>} : vector<10x16xf32>, vector<16x10xf32>, vector<10x10xf32> -> vector<10x10xf32>
    %c2_22 = arith.constant 2 : index
    %c0_23 = arith.constant 0 : index
    %c0_24 = arith.constant 0 : index
    %28 = vector.load %arg5[%c2_22, %c0_23, %c0_24] : memref<4x10x10xf32, #tpu.memory_space<vmem>>, vector<1x10x10xf32>
    %29 = vector.shape_cast %28 : vector<1x10x10xf32> to vector<10x10xf32>
    %30 = vector.shape_cast %27 : vector<10x10xf32> to vector<1x10x10xf32>
    tpu.vector_store %arg5[%c2_22, %c0_23, %c0_24], %30 {strides = array<i32>} : memref<4x10x10xf32, #tpu.memory_space<vmem>>, vector<1x10x10xf32>,
    %c3 = arith.constant 3 : index
    %c0_25 = arith.constant 0 : index
    %c0_26 = arith.constant 0 : index
    %31 = vector.load %arg4[%c3, %c0_25, %c0_26] : memref<4x16x16xf32, #tpu.memory_space<vmem>>, vector<1x16x16xf32>
    %32 = vector.shape_cast %31 : vector<1x16x16xf32> to vector<16x16xf32>
    %cst_27 = arith.constant dense<0.000000e+00> : vector<10x16xf32>
    %33 = tpu.matmul %8, %32, %cst_27 {dimension_numbers = #tpu.dot_dimension_numbers<[1], [0], [0], [1], [0, 0, 1, 1], [], []>} : vector<10x16xf32>, vector<16x16xf32>, vector<10x16xf32> -> vector<10x16xf32>
    %cst_28 = arith.constant dense<0.000000e+00> : vector<10x10xf32>
    %34 = tpu.matmul %33, %9, %cst_28 {dimension_numbers = #tpu.dot_dimension_numbers<[1], [0], [0], [1], [0, 0, 1, 1], [], []>} : vector<10x16xf32>, vector<16x10xf32>, vector<10x10xf32> -> vector<10x10xf32>
    %c3_29 = arith.constant 3 : index
    %c0_30 = arith.constant 0 : index
    %c0_31 = arith.constant 0 : index
    %35 = vector.load %arg5[%c3_29, %c0_30, %c0_31] : memref<4x10x10xf32, #tpu.memory_space<vmem>>, vector<1x10x10xf32>
    %36 = vector.shape_cast %35 : vector<1x10x10xf32> to vector<10x10xf32>
    %37 = vector.shape_cast %34 : vector<10x10xf32> to vector<1x10x10xf32>
    tpu.vector_store %arg5[%c3_29, %c0_30, %c0_31], %37 {strides = array<i32>} : memref<4x10x10xf32, #tpu.memory_space<vmem>>, vector<1x10x10xf32>,
    return
  }
  func.func @transform_0(%arg0: i32, %arg1: i32) -> (i32, i32) {
    %c0_i32 = arith.constant 0 : i32
    %c0_i32_0 = arith.constant 0 : i32
    return %arg1, %c0_i32 : i32, i32
  }
  func.func @transform_1(%arg0: i32, %arg1: i32) -> (i32, i32) {
    %c0_i32 = arith.constant 0 : i32
    %c0_i32_0 = arith.constant 0 : i32
    return %c0_i32, %arg0 : i32, i32
  }
  func.func @transform_2(%arg0: i32, %arg1: i32) -> (i32, i32, i32) {
    %c0_i32 = arith.constant 0 : i32
    %c0_i32_0 = arith.constant 0 : i32
    %c0_i32_1 = arith.constant 0 : i32
    %c0_i32_2 = arith.constant 0 : i32
    return %c0_i32, %c0_i32_0, %c0_i32_1 : i32, i32, i32
  }
  func.func @transform_3(%arg0: i32, %arg1: i32) -> (i32, i32, i32) {
    %c0_i32 = arith.constant 0 : i32
    %c0_i32_0 = arith.constant 0 : i32
    return %c0_i32, %arg1, %arg0 : i32, i32, i32
  }
}

</mosaic_0001>

<llo_original>
// kernel: _resize_call.1
$region0: #{_resize_call.1}
  #allocation0 [shape = 'u32[]', space=smem, size = 0x4, offset = 0x4, fixed_abs, tag = 'smem constant byte address 0x4 - core index']
  #allocation1 [shape = 'u32[144,128]{1,0:T(1,128)}', space=vmem, size = 0x12000, scoped, tag = 'internal scratch']
  #allocation2 [shape = 'f32[16,10]{1,0:T(8,128)}', space=vmem, size = 0x2000, scoped, tag = 'scratch operand']
  %s0 = inlined_call_operand.vmem [shape: s32[10,1], index: 0, kind: input, shape index: {}]
  %s1 = inlined_call_operand.vmem [shape: s32[1,10], index: 1, kind: input, shape index: {}]
  %s2 = inlined_call_operand.hbm [shape: f32[4,16,16], index: 2, kind: input, shape index: {}]
  %s3 = inlined_call_operand.vmem [shape: f32[4,10,10], index: 3, kind: output, shape index: {}]
  %s4 = sld [smem:[#allocation0]]
  $region30: #{_resize_call.1} parent=0
    _
  %s6 = ssub.s32 1, %s4
  %s7 = scalar_select 0, %s6, %s4
  $region1: #{_resize_call.1} parent=0
    #allocation3 [shape = 'u8[32768]{0}', space=vmem, size = 0x8000, scoped, tag = 'input window, operand 2, single buffered']
    #allocation4 [shape = 's32[1]{0}', space=sflag, size = 0x4, scoped, tag = 'scoped memory for _resize_call.1']
    %8 = vsyncpa [#allocation4], 0
    // Predicated region
    $region2: #{_resize_call.1} parent=1 // pred_check
      _
    $region3: #{_resize_call.1} parent=1 // pred_check_branch
      %10 = sbr.rel (0) target = $region5
    $region4: #{_resize_call.1} parent=1 // pred_region
      _
    $region5: #{_resize_call.1} parent=1 // pred_fallthru
      _
    // Predicated region
    $region6: #{_resize_call.1} parent=1 // pred_check
      _
    $region7: #{_resize_call.1} parent=1 // pred_check_branch
      %12 = sbr.rel (0) target = $region9
    $region8: #{_resize_call.1} parent=1 // pred_region
      _
    $region9: #{_resize_call.1} parent=1 // pred_fallthru
      _
    // Predicated region
    $region10: #{_resize_call.1} parent=1 // pred_check
      _
    $region11: #{_resize_call.1} parent=1 // pred_check_branch
      %14 = sbr.rel (0) target = $region13
    $region12: #{_resize_call.1} parent=1 // pred_region
      %s16 = ssub.s32 1024, 1024
      %17 = vsyncadd [#allocation4], %s16
      %s18 = sshll.u32 [#allocation3], 4
      %s19 = int_to_ptr.vmem [resolvable:$true] %s18
      %24 = dma.hbm_to_vmem [thread:$0]  %s2, 1024, %s19, [#allocation4], 128, 128, 8
    $region13: #{_resize_call.1} parent=1 // pred_fallthru
      _
    // Predicated region
    $region14: #{_resize_call.1} parent=1 // pred_check
      _
    $region15: #{_resize_call.1} parent=1 // pred_check_branch
      %26 = sbr.rel (0) target = $region17
    $region16: #{_resize_call.1} parent=1 // pred_region
      %27 = dma.done [#allocation4], 1024
    $region17: #{_resize_call.1} parent=1 // pred_fallthru
      _
    %p28 = scmp.eq.s32.totalorder 0, 0
    // Predicated region
    $region18: #{_resize_call.1} parent=1 // pred_check
      %p29 = pneg %p28
    $region19: #{_resize_call.1} parent=1 // pred_check_branch
      %31 = sbr.rel (%p29) target = $region21
    $region20: #{_resize_call.1} parent=1 // pred_region
      %v32 = vlaneseq
      %v33 = vshrl.u32 %v32, 7
      %v34 = vadd.s32 %v33, 8
      %v35 = vld [vmem:[%s1] sm:$0x1]
      %v36 = vlaneseq
      %v37 = vshrl.u32 %v36, 7
      %v38 = vsub.s32 0, %v37
      %v39 = vrot.slane %v35, %v38
      %vm40 = vcmp.eq.s32.totalorder %v33, %v39
      %vm41 = vcmp.eq.s32.totalorder %v34, %v39
      %v42 = vsel %vm40, 1, 0
      %v43 = vsel %vm41, 1, 0
      %v44 = vcvt.s32.f32 %v42
      %v45 = vcvt.s32.f32 %v43
      %vm46 = vcmask 80896
      %47 = vst.msk [vmem:[#allocation2] sm:$0xff] %vm46, %v44
      %48 = vst.msk [vmem:[#allocation2 + $0x8] sm:$0xff] %vm46, %v45
    $region21: #{_resize_call.1} parent=1 // pred_fallthru
      _
    %v49 = vlaneseq
    %v50 = vand.u32 %v49, 127
    %v51 = vld [vmem:[%s0] sm:$0xff]
    %v52 = vld [vmem:[%s0 + $0x8] sm:$0x3]
    %53 = vset.pattern.permute.xlu0 0
    %54 = vperm.xlu0 %53, %v51
    %v55 = vpop.permute.xlu0 %54
    %56 = vset.pattern.permute.xlu0 0
    %57 = vperm.xlu0 %56, %v52
    %v58 = vpop.permute.xlu0 %57
    %vm59 = vcmp.eq.s32.totalorder %v50, %v55
    %vm60 = vcmp.eq.s32.totalorder %v50, %v58
    %v61 = vsel %vm59, 1, 0
    %v62 = vsel %vm60, 1, 0
    %v63 = vcvt.s32.f32 %v61
    %v64 = vcvt.s32.f32 %v62
    %v65 = vld [vmem:[#allocation2] sm:$0xff]
    %v66 = vld [vmem:[#allocation2 + $0x8] sm:$0xff]
    %v67 = vld [vmem:[#allocation3] sm:$0xff]
    %v68 = vld [vmem:[#allocation3 + $0x8] sm:$0xff]
    %vm69 = vcmask 130048
    %v71 = vsel %vm69, %v63, 0
    %v74 = vsel %vm69, %v64, 0
    %76 = vmatprep.subr.mxu0 0.0
    %77 = vmatpush1.msra.mxu0 0.0
    %78 = vmatprep.subr.mxu0 0.0
    %79 = vmatpush1.msra.mxu0 0.0
    %80 = vmatprep.subr.mxu0 0.0
    %81 = vmatpush1.msra.mxu0 0.0
    %82 = vmatprep.subr.mxu0 0.0
    %83 = vmatpush1.msra.mxu0 0.0
    %84 = vmatprep.subr.mxu0 0.0
    %85 = vmatpush1.msra.mxu0 0.0
    %86 = vmatprep.subr.mxu0 0.0
    %87 = vmatpush1.msra.mxu0 0.0
    %88 = vmatprep.subr.mxu0 0.0
    %89 = vmatpush1.msra.mxu0 0.0
    %90 = vmatprep.subr.mxu0 0.0
    %91 = vmatpush1.msra.mxu0 0.0
    %92 = vmatprep.subr.mxu0 0.0
    %93 = vmatpush1.msra.mxu0 0.0
    %94 = vmatprep.subr.mxu0 0.0
    %95 = vmatpush1.msra.mxu0 0.0
    %96 = vmatprep.subr.mxu0 0.0
    %97 = vmatpush1.msra.mxu0 0.0
    %98 = vmatprep.subr.mxu0 0.0
    %99 = vmatpush1.msra.mxu0 0.0
    %100 = vmatprep.subr.mxu0 0.0
    %101 = vmatpush1.msra.mxu0 0.0
    %102 = vmatprep.subr.mxu0 0.0
    %103 = vmatpush1.msra.mxu0 0.0
    %104 = vmatprep.subr.mxu0 0.0
    %105 = vmatpush1.msra.mxu0 %v68
    %106 = vmatprep.subr.mxu0 0.0
    %107 = vmatpush1.msra.mxu0 %v67
    %108 = vmatprep.subr.mxu0 0.0
    %109 = vmatpush2.msra.mxu0 0.0
    %110 = vmatprep.subr.mxu0 0.0
    %111 = vmatpush2.msra.mxu0 0.0
    %112 = vmatprep.subr.mxu0 0.0
    %113 = vmatpush2.msra.mxu0 0.0
    %114 = vmatprep.subr.mxu0 0.0
    %115 = vmatpush2.msra.mxu0 0.0
    %116 = vmatprep.subr.mxu0 0.0
    %117 = vmatpush2.msra.mxu0 0.0
    %118 = vmatprep.subr.mxu0 0.0
    %119 = vmatpush2.msra.mxu0 0.0
    %120 = vmatprep.subr.mxu0 0.0
    %121 = vmatpush2.msra.mxu0 0.0
    %122 = vmatprep.subr.mxu0 0.0
    %123 = vmatpush2.msra.mxu0 0.0
    %124 = vmatprep.subr.mxu0 0.0
    %125 = vmatpush2.msra.mxu0 0.0
    %126 = vmatprep.subr.mxu0 0.0
    %127 = vmatpush2.msra.mxu0 0.0
    %128 = vmatprep.subr.mxu0 0.0
    %129 = vmatpush2.msra.mxu0 0.0
    %130 = vmatprep.subr.mxu0 0.0
    %131 = vmatpush2.msra.mxu0 0.0
    %132 = vmatprep.subr.mxu0 0.0
    %133 = vmatpush2.msra.mxu0 0.0
    %134 = vmatprep.subr.mxu0 0.0
    %135 = vmatpush2.msra.mxu0 0.0
    %136 = vmatprep.subr.mxu0 0.0
    %137 = vmatpush2.msra.mxu0 0.0
    %138 = vmatprep.subr.mxu0 0.0
    %139 = vmatpush2.msra.mxu0 0.0
    %140 = vmatprep.mubr.f32.mxu0 0.0
    %141 = vmatmul.mubr.f32.gmra.mxu0 %v71
    %v142 = vpop.f32.mrf.mxu0
    %v143 = vadd.f32 0.0, %v142
    %v144 = vpop.f32.mrf.mxu0
    %145 = vmatprep.mubr.f32.mxu0 0.0
    %146 = vmatmul.mubr.f32.gmra.mxu0 %v74
    %v147 = vpop.f32.mrf.mxu0
    %v148 = vadd.f32 0.0, %v147
    %v149 = vpop.f32.mrf.mxu0
    %150 = vdwg.mxu0
    %v152 = vsel %vm69, %v143, 0
    %v155 = vsel %vm69, %v148, 0
    %157 = vmatprep.subr.mxu0 0.0
    %158 = vmatpush1.msra.mxu0 0.0
    %159 = vmatprep.subr.mxu0 0.0
    %160 = vmatpush1.msra.mxu0 0.0
    %161 = vmatprep.subr.mxu0 0.0
    %162 = vmatpush1.msra.mxu0 0.0
    %163 = vmatprep.subr.mxu0 0.0
    %164 = vmatpush1.msra.mxu0 0.0
    %165 = vmatprep.subr.mxu0 0.0
    %166 = vmatpush1.msra.mxu0 0.0
    %167 = vmatprep.subr.mxu0 0.0
    %168 = vmatpush1.msra.mxu0 0.0
    %169 = vmatprep.subr.mxu0 0.0
    %170 = vmatpush1.msra.mxu0 0.0
    %171 = vmatprep.subr.mxu0 0.0
    %172 = vmatpush1.msra.mxu0 0.0
    %173 = vmatprep.subr.mxu0 0.0
    %174 = vmatpush1.msra.mxu0 0.0
    %175 = vmatprep.subr.mxu0 0.0
    %176 = vmatpush1.msra.mxu0 0.0
    %177 = vmatprep.subr.mxu0 0.0
    %178 = vmatpush1.msra.mxu0 0.0
    %179 = vmatprep.subr.mxu0 0.0
    %180 = vmatpush1.msra.mxu0 0.0
    %181 = vmatprep.subr.mxu0 0.0
    %182 = vmatpush1.msra.mxu0 0.0
    %183 = vmatprep.subr.mxu0 0.0
    %184 = vmatpush1.msra.mxu0 0.0
    %185 = vmatprep.subr.mxu0 0.0
    %186 = vmatpush1.msra.mxu0 %v66
    %187 = vmatprep.subr.mxu0 0.0
    %188 = vmatpush1.msra.mxu0 %v65
    %189 = vmatprep.subr.mxu0 0.0
    %190 = vmatpush2.msra.mxu0 0.0
    %191 = vmatprep.subr.mxu0 0.0
    %192 = vmatpush2.msra.mxu0 0.0
    %193 = vmatprep.subr.mxu0 0.0
    %194 = vmatpush2.msra.mxu0 0.0
    %195 = vmatprep.subr.mxu0 0.0
    %196 = vmatpush2.msra.mxu0 0.0
    %197 = vmatprep.subr.mxu0 0.0
    %198 = vmatpush2.msra.mxu0 0.0
    %199 = vmatprep.subr.mxu0 0.0
    %200 = vmatpush2.msra.mxu0 0.0
    %201 = vmatprep.subr.mxu0 0.0
    %202 = vmatpush2.msra.mxu0 0.0
    %203 = vmatprep.subr.mxu0 0.0
    %204 = vmatpush2.msra.mxu0 0.0
    %205 = vmatprep.subr.mxu0 0.0
    %206 = vmatpush2.msra.mxu0 0.0
    %207 = vmatprep.subr.mxu0 0.0
    %208 = vmatpush2.msra.mxu0 0.0
    %209 = vmatprep.subr.mxu0 0.0
    %210 = vmatpush2.msra.mxu0 0.0
    %211 = vmatprep.subr.mxu0 0.0
    %212 = vmatpush2.msra.mxu0 0.0
    %213 = vmatprep.subr.mxu0 0.0
    %214 = vmatpush2.msra.mxu0 0.0
    %215 = vmatprep.subr.mxu0 0.0
    %216 = vmatpush2.msra.mxu0 0.0
    %217 = vmatprep.subr.mxu0 0.0
    %218 = vmatpush2.msra.mxu0 0.0
    %219 = vmatprep.subr.mxu0 0.0
    %220 = vmatpush2.msra.mxu0 0.0
    %221 = vmatprep.mubr.f32.mxu0 0.0
    %222 = vmatmul.mubr.f32.gmra.mxu0 %v152
    %v223 = vpop.f32.mrf.mxu0
    %v224 = vadd.f32 0.0, %v223
    %v225 = vpop.f32.mrf.mxu0
    %226 = vmatprep.mubr.f32.mxu0 0.0
    %227 = vmatmul.mubr.f32.gmra.mxu0 %v155
    %v228 = vpop.f32.mrf.mxu0
    %v229 = vadd.f32 0.0, %v228
    %v230 = vpop.f32.mrf.mxu0
    %231 = vdwg.mxu0
    %vm232 = vcmask 80896
    %233 = vst.msk [vmem:[%s3] sm:$0xff] %vm232, %v224
    %vm234 = vcmask 74752
    %235 = vst.msk [vmem:[%s3 + $0x8] sm:$0x3] %vm234, %v229
    %s236 = scalar_lea.vmem [#allocation3], 16
    %v237 = vld [vmem:[%s236] sm:$0xff]
    %v238 = vld [vmem:[%s236 + $0x8] sm:$0xff]
    %239 = vmatprep.subr.mxu0 0.0
    %240 = vmatpush1.msra.mxu0 0.0
    %241 = vmatprep.subr.mxu0 0.0
    %242 = vmatpush1.msra.mxu0 0.0
    %243 = vmatprep.subr.mxu0 0.0
    %244 = vmatpush1.msra.mxu0 0.0
    %245 = vmatprep.subr.mxu0 0.0
    %246 = vmatpush1.msra.mxu0 0.0
    %247 = vmatprep.subr.mxu0 0.0
    %248 = vmatpush1.msra.mxu0 0.0
    %249 = vmatprep.subr.mxu0 0.0
    %250 = vmatpush1.msra.mxu0 0.0
    %251 = vmatprep.subr.mxu0 0.0
    %252 = vmatpush1.msra.mxu0 0.0
    %253 = vmatprep.subr.mxu0 0.0
    %254 = vmatpush1.msra.mxu0 0.0
    %255 = vmatprep.subr.mxu0 0.0
    %256 = vmatpush1.msra.mxu0 0.0
    %257 = vmatprep.subr.mxu0 0.0
    %258 = vmatpush1.msra.mxu0 0.0
    %259 = vmatprep.subr.mxu0 0.0
    %260 = vmatpush1.msra.mxu0 0.0
    %261 = vmatprep.subr.mxu0 0.0
    %262 = vmatpush1.msra.mxu0 0.0
    %263 = vmatprep.subr.mxu0 0.0
    %264 = vmatpush1.msra.mxu0 0.0
    %265 = vmatprep.subr.mxu0 0.0
    %266 = vmatpush1.msra.mxu0 0.0
    %267 = vmatprep.subr.mxu0 0.0
    %268 = vmatpush1.msra.mxu0 %v238
    %269 = vmatprep.subr.mxu0 0.0
    %270 = vmatpush1.msra.mxu0 %v237
    %271 = vmatprep.subr.mxu0 0.0
    %272 = vmatpush2.msra.mxu0 0.0
    %273 = vmatprep.subr.mxu0 0.0
    %274 = vmatpush2.msra.mxu0 0.0
    %275 = vmatprep.subr.mxu0 0.0
    %276 = vmatpush2.msra.mxu0 0.0
    %277 = vmatprep.subr.mxu0 0.0
    %278 = vmatpush2.msra.mxu0 0.0
    %279 = vmatprep.subr.mxu0 0.0
    %280 = vmatpush2.msra.mxu0 0.0
    %281 = vmatprep.subr.mxu0 0.0
    %282 = vmatpush2.msra.mxu0 0.0
    %283 = vmatprep.subr.mxu0 0.0
    %284 = vmatpush2.msra.mxu0 0.0
    %285 = vmatprep.subr.mxu0 0.0
    %286 = vmatpush2.msra.mxu0 0.0
    %287 = vmatprep.subr.mxu0 0.0
    %288 = vmatpush2.msra.mxu0 0.0
    %289 = vmatprep.subr.mxu0 0.0
    %290 = vmatpush2.msra.mxu0 0.0
    %291 = vmatprep.subr.mxu0 0.0
    %292 = vmatpush2.msra.mxu0 0.0
    %293 = vmatprep.subr.mxu0 0.0
    %294 = vmatpush2.msra.mxu0 0.0
    %295 = vmatprep.subr.mxu0 0.0
    %296 = vmatpush2.msra.mxu0 0.0
    %297 = vmatprep.subr.mxu0 0.0
    %298 = vmatpush2.msra.mxu0 0.0
    %299 = vmatprep.subr.mxu0 0.0
    %300 = vmatpush2.msra.mxu0 0.0
    %301 = vmatprep.subr.mxu0 0.0
    %302 = vmatpush2.msra.mxu0 0.0
    %303 = vmatprep.mubr.f32.mxu0 0.0
    %304 = vmatmul.mubr.f32.gmra.mxu0 %v71
    %v305 = vpop.f32.mrf.mxu0
    %v306 = vadd.f32 0.0, %v305
    %v307 = vpop.f32.mrf.mxu0
    %308 = vmatprep.mubr.f32.mxu0 0.0
    %309 = vmatmul.mubr.f32.gmra.mxu0 %v74
    %v310 = vpop.f32.mrf.mxu0
    %v311 = vadd.f32 0.0, %v310
    %v312 = vpop.f32.mrf.mxu0
    %313 = vdwg.mxu0
    %v315 = vsel %vm69, %v306, 0
    %v318 = vsel %vm69, %v311, 0
    %320 = vmatprep.subr.mxu0 0.0
    %321 = vmatpush1.msra.mxu0 0.0
    %322 = vmatprep.subr.mxu0 0.0
    %323 = vmatpush1.msra.mxu0 0.0
    %324 = vmatprep.subr.mxu0 0.0
    %325 = vmatpush1.msra.mxu0 0.0
    %326 = vmatprep.subr.mxu0 0.0
    %327 = vmatpush1.msra.mxu0 0.0
    %328 = vmatprep.subr.mxu0 0.0
    %329 = vmatpush1.msra.mxu0 0.0
    %330 = vmatprep.subr.mxu0 0.0
    %331 = vmatpush1.msra.mxu0 0.0
    %332 = vmatprep.subr.mxu0 0.0
    %333 = vmatpush1.msra.mxu0 0.0
    %334 = vmatprep.subr.mxu0 0.0
    %335 = vmatpush1.msra.mxu0 0.0
    %336 = vmatprep.subr.mxu0 0.0
    %337 = vmatpush1.msra.mxu0 0.0
    %338 = vmatprep.subr.mxu0 0.0
    %339 = vmatpush1.msra.mxu0 0.0
    %340 = vmatprep.subr.mxu0 0.0
    %341 = vmatpush1.msra.mxu0 0.0
    %342 = vmatprep.subr.mxu0 0.0
    %343 = vmatpush1.msra.mxu0 0.0
    %344 = vmatprep.subr.mxu0 0.0
    %345 = vmatpush1.msra.mxu0 0.0
    %346 = vmatprep.subr.mxu0 0.0
    %347 = vmatpush1.msra.mxu0 0.0
    %348 = vmatprep.subr.mxu0 0.0
    %349 = vmatpush1.msra.mxu0 %v66
    %350 = vmatprep.subr.mxu0 0.0
    %351 = vmatpush1.msra.mxu0 %v65
    %352 = vmatprep.subr.mxu0 0.0
    %353 = vmatpush2.msra.mxu0 0.0
    %354 = vmatprep.subr.mxu0 0.0
    %355 = vmatpush2.msra.mxu0 0.0
    %356 = vmatprep.subr.mxu0 0.0
    %357 = vmatpush2.msra.mxu0 0.0
    %358 = vmatprep.subr.mxu0 0.0
    %359 = vmatpush2.msra.mxu0 0.0
    %360 = vmatprep.subr.mxu0 0.0
    %361 = vmatpush2.msra.mxu0 0.0
    %362 = vmatprep.subr.mxu0 0.0
    %363 = vmatpush2.msra.mxu0 0.0
    %364 = vmatprep.subr.mxu0 0.0
    %365 = vmatpush2.msra.mxu0 0.0
    %366 = vmatprep.subr.mxu0 0.0
    %367 = vmatpush2.msra.mxu0 0.0
    %368 = vmatprep.subr.mxu0 0.0
    %369 = vmatpush2.msra.mxu0 0.0
    %370 = vmatprep.subr.mxu0 0.0
    %371 = vmatpush2.msra.mxu0 0.0
    %372 = vmatprep.subr.mxu0 0.0
    %373 = vmatpush2.msra.mxu0 0.0
    %374 = vmatprep.subr.mxu0 0.0
    %375 = vmatpush2.msra.mxu0 0.0
    %376 = vmatprep.subr.mxu0 0.0
    %377 = vmatpush2.msra.mxu0 0.0
    %378 = vmatprep.subr.mxu0 0.0
    %379 = vmatpush2.msra.mxu0 0.0
    %380 = vmatprep.subr.mxu0 0.0
    %381 = vmatpush2.msra.mxu0 0.0
    %382 = vmatprep.subr.mxu0 0.0
    %383 = vmatpush2.msra.mxu0 0.0
    %384 = vmatprep.mubr.f32.mxu0 0.0
    %385 = vmatmul.mubr.f32.gmra.mxu0 %v315
    %v386 = vpop.f32.mrf.mxu0
    %v387 = vadd.f32 0.0, %v386
    %v388 = vpop.f32.mrf.mxu0
    %389 = vmatprep.mubr.f32.mxu0 0.0
    %390 = vmatmul.mubr.f32.gmra.mxu0 %v318
    %v391 = vpop.f32.mrf.mxu0
    %v392 = vadd.f32 0.0, %v391
    %v393 = vpop.f32.mrf.mxu0
    %394 = vdwg.mxu0
    %s395 = scalar_lea.vmem %s3, 16
    %396 = vst.msk [vmem:[%s395] sm:$0xff] %vm232, %v387
    %397 = vst.msk [vmem:[%s395 + $0x8] sm:$0x3] %vm234, %v392
    %s398 = scalar_lea.vmem [#allocation3], 32
    %v399 = vld [vmem:[%s398] sm:$0xff]
    %v400 = vld [vmem:[%s398 + $0x8] sm:$0xff]
    %401 = vmatprep.subr.mxu0 0.0
    %402 = vmatpush1.msra.mxu0 0.0
    %403 = vmatprep.subr.mxu0 0.0
    %404 = vmatpush1.msra.mxu0 0.0
    %405 = vmatprep.subr.mxu0 0.0
    %406 = vmatpush1.msra.mxu0 0.0
    %407 = vmatprep.subr.mxu0 0.0
    %408 = vmatpush1.msra.mxu0 0.0
    %409 = vmatprep.subr.mxu0 0.0
    %410 = vmatpush1.msra.mxu0 0.0
    %411 = vmatprep.subr.mxu0 0.0
    %412 = vmatpush1.msra.mxu0 0.0
    %413 = vmatprep.subr.mxu0 0.0
    %414 = vmatpush1.msra.mxu0 0.0
    %415 = vmatprep.subr.mxu0 0.0
    %416 = vmatpush1.msra.mxu0 0.0
    %417 = vmatprep.subr.mxu0 0.0
    %418 = vmatpush1.msra.mxu0 0.0
    %419 = vmatprep.subr.mxu0 0.0
    %420 = vmatpush1.msra.mxu0 0.0
    %421 = vmatprep.subr.mxu0 0.0
    %422 = vmatpush1.msra.mxu0 0.0
    %423 = vmatprep.subr.mxu0 0.0
    %424 = vmatpush1.msra.mxu0 0.0
    %425 = vmatprep.subr.mxu0 0.0
    %426 = vmatpush1.msra.mxu0 0.0
    %427 = vmatprep.subr.mxu0 0.0
    %428 = vmatpush1.msra.mxu0 0.0
    %429 = vmatprep.subr.mxu0 0.0
    %430 = vmatpush1.msra.mxu0 %v400
    %431 = vmatprep.subr.mxu0 0.0
    %432 = vmatpush1.msra.mxu0 %v399
    %433 = vmatprep.subr.mxu0 0.0
    %434 = vmatpush2.msra.mxu0 0.0
    %435 = vmatprep.subr.mxu0 0.0
    %436 = vmatpush2.msra.mxu0 0.0
    %437 = vmatprep.subr.mxu0 0.0
    %438 = vmatpush2.msra.mxu0 0.0
    %439 = vmatprep.subr.mxu0 0.0
    %440 = vmatpush2.msra.mxu0 0.0
    %441 = vmatprep.subr.mxu0 0.0
    %442 = vmatpush2.msra.mxu0 0.0
    %443 = vmatprep.subr.mxu0 0.0
    %444 = vmatpush2.msra.mxu0 0.0
    %445 = vmatprep.subr.mxu0 0.0
    %446 = vmatpush2.msra.mxu0 0.0
    %447 = vmatprep.subr.mxu0 0.0
    %448 = vmatpush2.msra.mxu0 0.0
    %449 = vmatprep.subr.mxu0 0.0
    %450 = vmatpush2.msra.mxu0 0.0
    %451 = vmatprep.subr.mxu0 0.0
    %452 = vmatpush2.msra.mxu0 0.0
    %453 = vmatprep.subr.mxu0 0.0
    %454 = vmatpush2.msra.mxu0 0.0
    %455 = vmatprep.subr.mxu0 0.0
    %456 = vmatpush2.msra.mxu0 0.0
    %457 = vmatprep.subr.mxu0 0.0
    %458 = vmatpush2.msra.mxu0 0.0
    %459 = vmatprep.subr.mxu0 0.0
    %460 = vmatpush2.msra.mxu0 0.0
    %461 = vmatprep.subr.mxu0 0.0
    %462 = vmatpush2.msra.mxu0 0.0
    %463 = vmatprep.subr.mxu0 0.0
    %464 = vmatpush2.msra.mxu0 0.0
    %465 = vmatprep.mubr.f32.mxu0 0.0
    %466 = vmatmul.mubr.f32.gmra.mxu0 %v71
    %v467 = vpop.f32.mrf.mxu0
    %v468 = vadd.f32 0.0, %v467
    %v469 = vpop.f32.mrf.mxu0
    %470 = vmatprep.mubr.f32.mxu0 0.0
    %471 = vmatmul.mubr.f32.gmra.mxu0 %v74
    %v472 = vpop.f32.mrf.mxu0
    %v473 = vadd.f32 0.0, %v472
    %v474 = vpop.f32.mrf.mxu0
    %475 = vdwg.mxu0
    %v477 = vsel %vm69, %v468, 0
    %v480 = vsel %vm69, %v473, 0
    %482 = vmatprep.subr.mxu0 0.0
    %483 = vmatpush1.msra.mxu0 0.0
    %484 = vmatprep.subr.mxu0 0.0
    %485 = vmatpush1.msra.mxu0 0.0
    %486 = vmatprep.subr.mxu0 0.0
    %487 = vmatpush1.msra.mxu0 0.0
    %488 = vmatprep.subr.mxu0 0.0
    %489 = vmatpush1.msra.mxu0 0.0
    %490 = vmatprep.subr.mxu0 0.0
    %491 = vmatpush1.msra.mxu0 0.0
    %492 = vmatprep.subr.mxu0 0.0
    %493 = vmatpush1.msra.mxu0 0.0
    %494 = vmatprep.subr.mxu0 0.0
    %495 = vmatpush1.msra.mxu0 0.0
    %496 = vmatprep.subr.mxu0 0.0
    %497 = vmatpush1.msra.mxu0 0.0
    %498 = vmatprep.subr.mxu0 0.0
    %499 = vmatpush1.msra.mxu0 0.0
    %500 = vmatprep.subr.mxu0 0.0
    %501 = vmatpush1.msra.mxu0 0.0
    %502 = vmatprep.subr.mxu0 0.0
    %503 = vmatpush1.msra.mxu0 0.0
    %504 = vmatprep.subr.mxu0 0.0
    %505 = vmatpush1.msra.mxu0 0.0
    %506 = vmatprep.subr.mxu0 0.0
    %507 = vmatpush1.msra.mxu0 0.0
    %508 = vmatprep.subr.mxu0 0.0
    %509 = vmatpush1.msra.mxu0 0.0
    %510 = vmatprep.subr.mxu0 0.0
    %511 = vmatpush1.msra.mxu0 %v66
    %512 = vmatprep.subr.mxu0 0.0
    %513 = vmatpush1.msra.mxu0 %v65
    %514 = vmatprep.subr.mxu0 0.0
    %515 = vmatpush2.msra.mxu0 0.0
    %516 = vmatprep.subr.mxu0 0.0
    %517 = vmatpush2.msra.mxu0 0.0
    %518 = vmatprep.subr.mxu0 0.0
    %519 = vmatpush2.msra.mxu0 0.0
    %520 = vmatprep.subr.mxu0 0.0
    %521 = vmatpush2.msra.mxu0 0.0
    %522 = vmatprep.subr.mxu0 0.0
    %523 = vmatpush2.msra.mxu0 0.0
    %524 = vmatprep.subr.mxu0 0.0
    %525 = vmatpush2.msra.mxu0 0.0
    %526 = vmatprep.subr.mxu0 0.0
    %527 = vmatpush2.msra.mxu0 0.0
    %528 = vmatprep.subr.mxu0 0.0
    %529 = vmatpush2.msra.mxu0 0.0
    %530 = vmatprep.subr.mxu0 0.0
    %531 = vmatpush2.msra.mxu0 0.0
    %532 = vmatprep.subr.mxu0 0.0
    %533 = vmatpush2.msra.mxu0 0.0
    %534 = vmatprep.subr.mxu0 0.0
    %535 = vmatpush2.msra.mxu0 0.0
    %536 = vmatprep.subr.mxu0 0.0
    %537 = vmatpush2.msra.mxu0 0.0
    %538 = vmatprep.subr.mxu0 0.0
    %539 = vmatpush2.msra.mxu0 0.0
    %540 = vmatprep.subr.mxu0 0.0
    %541 = vmatpush2.msra.mxu0 0.0
    %542 = vmatprep.subr.mxu0 0.0
    %543 = vmatpush2.msra.mxu0 0.0
    %544 = vmatprep.subr.mxu0 0.0
    %545 = vmatpush2.msra.mxu0 0.0
    %546 = vmatprep.mubr.f32.mxu0 0.0
    %547 = vmatmul.mubr.f32.gmra.mxu0 %v477
    %v548 = vpop.f32.mrf.mxu0
    %v549 = vadd.f32 0.0, %v548
    %v550 = vpop.f32.mrf.mxu0
    %551 = vmatprep.mubr.f32.mxu0 0.0
    %552 = vmatmul.mubr.f32.gmra.mxu0 %v480
    %v553 = vpop.f32.mrf.mxu0
    %v554 = vadd.f32 0.0, %v553
    %v555 = vpop.f32.mrf.mxu0
    %556 = vdwg.mxu0
    %s557 = scalar_lea.vmem %s3, 32
    %558 = vst.msk [vmem:[%s557] sm:$0xff] %vm232, %v549
    %559 = vst.msk [vmem:[%s557 + $0x8] sm:$0x3] %vm234, %v554
    %s560 = scalar_lea.vmem [#allocation3], 48
    %v561 = vld [vmem:[%s560] sm:$0xff]
    %v562 = vld [vmem:[%s560 + $0x8] sm:$0xff]
    %563 = vmatprep.subr.mxu0 0.0
    %564 = vmatpush1.msra.mxu0 0.0
    %565 = vmatprep.subr.mxu0 0.0
    %566 = vmatpush1.msra.mxu0 0.0
    %567 = vmatprep.subr.mxu0 0.0
    %568 = vmatpush1.msra.mxu0 0.0
    %569 = vmatprep.subr.mxu0 0.0
    %570 = vmatpush1.msra.mxu0 0.0
    %571 = vmatprep.subr.mxu0 0.0
    %572 = vmatpush1.msra.mxu0 0.0
    %573 = vmatprep.subr.mxu0 0.0
    %574 = vmatpush1.msra.mxu0 0.0
    %575 = vmatprep.subr.mxu0 0.0
    %576 = vmatpush1.msra.mxu0 0.0
    %577 = vmatprep.subr.mxu0 0.0
    %578 = vmatpush1.msra.mxu0 0.0
    %579 = vmatprep.subr.mxu0 0.0
    %580 = vmatpush1.msra.mxu0 0.0
    %581 = vmatprep.subr.mxu0 0.0
    %582 = vmatpush1.msra.mxu0 0.0
    %583 = vmatprep.subr.mxu0 0.0
    %584 = vmatpush1.msra.mxu0 0.0
    %585 = vmatprep.subr.mxu0 0.0
    %586 = vmatpush1.msra.mxu0 0.0
    %587 = vmatprep.subr.mxu0 0.0
    %588 = vmatpush1.msra.mxu0 0.0
    %589 = vmatprep.subr.mxu0 0.0
    %590 = vmatpush1.msra.mxu0 0.0
    %591 = vmatprep.subr.mxu0 0.0
    %592 = vmatpush1.msra.mxu0 %v562
    %593 = vmatprep.subr.mxu0 0.0
    %594 = vmatpush1.msra.mxu0 %v561
    %595 = vmatprep.subr.mxu0 0.0
    %596 = vmatpush2.msra.mxu0 0.0
    %597 = vmatprep.subr.mxu0 0.0
    %598 = vmatpush2.msra.mxu0 0.0
    %599 = vmatprep.subr.mxu0 0.0
    %600 = vmatpush2.msra.mxu0 0.0
    %601 = vmatprep.subr.mxu0 0.0
    %602 = vmatpush2.msra.mxu0 0.0
    %603 = vmatprep.subr.mxu0 0.0
    %604 = vmatpush2.msra.mxu0 0.0
    %605 = vmatprep.subr.mxu0 0.0
    %606 = vmatpush2.msra.mxu0 0.0
    %607 = vmatprep.subr.mxu0 0.0
    %608 = vmatpush2.msra.mxu0 0.0
    %609 = vmatprep.subr.mxu0 0.0
    %610 = vmatpush2.msra.mxu0 0.0
    %611 = vmatprep.subr.mxu0 0.0
    %612 = vmatpush2.msra.mxu0 0.0
    %613 = vmatprep.subr.mxu0 0.0
    %614 = vmatpush2.msra.mxu0 0.0
    %615 = vmatprep.subr.mxu0 0.0
    %616 = vmatpush2.msra.mxu0 0.0
    %617 = vmatprep.subr.mxu0 0.0
    %618 = vmatpush2.msra.mxu0 0.0
    %619 = vmatprep.subr.mxu0 0.0
    %620 = vmatpush2.msra.mxu0 0.0
    %621 = vmatprep.subr.mxu0 0.0
    %622 = vmatpush2.msra.mxu0 0.0
    %623 = vmatprep.subr.mxu0 0.0
    %624 = vmatpush2.msra.mxu0 0.0
    %625 = vmatprep.subr.mxu0 0.0
    %626 = vmatpush2.msra.mxu0 0.0
    %627 = vmatprep.mubr.f32.mxu0 0.0
    %628 = vmatmul.mubr.f32.gmra.mxu0 %v71
    %v629 = vpop.f32.mrf.mxu0
    %v630 = vadd.f32 0.0, %v629
    %v631 = vpop.f32.mrf.mxu0
    %632 = vmatprep.mubr.f32.mxu0 0.0
    %633 = vmatmul.mubr.f32.gmra.mxu0 %v74
    %v634 = vpop.f32.mrf.mxu0
    %v635 = vadd.f32 0.0, %v634
    %v636 = vpop.f32.mrf.mxu0
    %637 = vdwg.mxu0
    %v639 = vsel %vm69, %v630, 0
    %v642 = vsel %vm69, %v635, 0
    %644 = vmatprep.subr.mxu0 0.0
    %645 = vmatpush1.msra.mxu0 0.0
    %646 = vmatprep.subr.mxu0 0.0
    %647 = vmatpush1.msra.mxu0 0.0
    %648 = vmatprep.subr.mxu0 0.0
    %649 = vmatpush1.msra.mxu0 0.0
    %650 = vmatprep.subr.mxu0 0.0
    %651 = vmatpush1.msra.mxu0 0.0
    %652 = vmatprep.subr.mxu0 0.0
    %653 = vmatpush1.msra.mxu0 0.0
    %654 = vmatprep.subr.mxu0 0.0
    %655 = vmatpush1.msra.mxu0 0.0
    %656 = vmatprep.subr.mxu0 0.0
    %657 = vmatpush1.msra.mxu0 0.0
    %658 = vmatprep.subr.mxu0 0.0
    %659 = vmatpush1.msra.mxu0 0.0
    %660 = vmatprep.subr.mxu0 0.0
    %661 = vmatpush1.msra.mxu0 0.0
    %662 = vmatprep.subr.mxu0 0.0
    %663 = vmatpush1.msra.mxu0 0.0
    %664 = vmatprep.subr.mxu0 0.0
    %665 = vmatpush1.msra.mxu0 0.0
    %666 = vmatprep.subr.mxu0 0.0
    %667 = vmatpush1.msra.mxu0 0.0
    %668 = vmatprep.subr.mxu0 0.0
    %669 = vmatpush1.msra.mxu0 0.0
    %670 = vmatprep.subr.mxu0 0.0
    %671 = vmatpush1.msra.mxu0 0.0
    %672 = vmatprep.subr.mxu0 0.0
    %673 = vmatpush1.msra.mxu0 %v66
    %674 = vmatprep.subr.mxu0 0.0
    %675 = vmatpush1.msra.mxu0 %v65
    %676 = vmatprep.subr.mxu0 0.0
    %677 = vmatpush2.msra.mxu0 0.0
    %678 = vmatprep.subr.mxu0 0.0
    %679 = vmatpush2.msra.mxu0 0.0
    %680 = vmatprep.subr.mxu0 0.0
    %681 = vmatpush2.msra.mxu0 0.0
    %682 = vmatprep.subr.mxu0 0.0
    %683 = vmatpush2.msra.mxu0 0.0
    %684 = vmatprep.subr.mxu0 0.0
    %685 = vmatpush2.msra.mxu0 0.0
    %686 = vmatprep.subr.mxu0 0.0
    %687 = vmatpush2.msra.mxu0 0.0
    %688 = vmatprep.subr.mxu0 0.0
    %689 = vmatpush2.msra.mxu0 0.0
    %690 = vmatprep.subr.mxu0 0.0
    %691 = vmatpush2.msra.mxu0 0.0
    %692 = vmatprep.subr.mxu0 0.0
    %693 = vmatpush2.msra.mxu0 0.0
    %694 = vmatprep.subr.mxu0 0.0
    %695 = vmatpush2.msra.mxu0 0.0
    %696 = vmatprep.subr.mxu0 0.0
    %697 = vmatpush2.msra.mxu0 0.0
    %698 = vmatprep.subr.mxu0 0.0
    %699 = vmatpush2.msra.mxu0 0.0
    %700 = vmatprep.subr.mxu0 0.0
    %701 = vmatpush2.msra.mxu0 0.0
    %702 = vmatprep.subr.mxu0 0.0
    %703 = vmatpush2.msra.mxu0 0.0
    %704 = vmatprep.subr.mxu0 0.0
    %705 = vmatpush2.msra.mxu0 0.0
    %706 = vmatprep.subr.mxu0 0.0
    %707 = vmatpush2.msra.mxu0 0.0
    %708 = vmatprep.mubr.f32.mxu0 0.0
    %709 = vmatmul.mubr.f32.gmra.mxu0 %v639
    %v710 = vpop.f32.mrf.mxu0
    %v711 = vadd.f32 0.0, %v710
    %v712 = vpop.f32.mrf.mxu0
    %713 = vmatprep.mubr.f32.mxu0 0.0
    %714 = vmatmul.mubr.f32.gmra.mxu0 %v642
    %v715 = vpop.f32.mrf.mxu0
    %v716 = vadd.f32 0.0, %v715
    %v717 = vpop.f32.mrf.mxu0
    %718 = vdwg.mxu0
    %s719 = scalar_lea.vmem %s3, 48
    %720 = vst.msk [vmem:[%s719] sm:$0xff] %vm232, %v711
    %721 = vst.msk [vmem:[%s719 + $0x8] sm:$0x3] %vm234, %v716
    // Predicated region
    $region22: #{_resize_call.1} parent=1 // pred_check
      _
    $region23: #{_resize_call.1} parent=1 // pred_check_branch
      %723 = sbr.rel (0) target = $region25
    $region24: #{_resize_call.1} parent=1 // pred_region
      _
    $region25: #{_resize_call.1} parent=1 // pred_fallthru
      _
    // Predicated region
    $region26: #{_resize_call.1} parent=1 // pred_check
      _
    $region27: #{_resize_call.1} parent=1 // pred_check_branch
      %725 = sbr.rel (0) target = $region29
    $region28: #{_resize_call.1} parent=1 // pred_region
      _
    $region29: #{_resize_call.1} parent=1 // pred_fallthru
      _
    %726 = vsyncpa [#allocation4], 1

</llo_original>
